<compile_context>
chip_gen: v7x
topology: tpu7x:2x2x1
jax: 0.10.0
libtpu: 0.0.40
codegen_flags: <defaults>
</compile_context>

<pallas_src>
import functools

import jax
import jax.numpy as jnp
from jax.experimental import pallas as pl
from jax.experimental.pallas import tpu as pltpu


_LANE = 128
_SUBLANE = 8
_MAX_ROW_TILE = 1024     # 512+ deep tiles already sit on the HBM roofline plateau
_MAX_COL_TILE = 32768    # sanity cap on lane-tile width (keeps tiny-N blocks >= ~1 MiB)


def _round_up(v, m):
    return ((v + m - 1) // m) * m


def _round_down(v, m):
    return (v // m) * m


@functools.lru_cache(maxsize=1)
def _tpu_config():
    """Generation-aware VMEM sizing.

    v5e / v6e : 128 MiB VMEM, single TensorCore -> big budget, no 2-tile minimum.
    v7x       :  64 MiB VMEM per TC, two TensorCores -> small budget and keep the
                 "parallel" column axis >= 2 tiles so both cores get work.
    Unknown / query failure -> conservative (v7x-like) settings.
    """
    vmem_cap = 0
    try:
        vmem_cap = int(pltpu.get_tpu_info().vmem_capacity_bytes)
    except Exception:
        vmem_cap = 0
    if vmem_cap >= (128 << 20):
        return {"budget": 80 << 20, "vmem_limit_cap": 96 << 20, "multi_core": False}
    return {"budget": 24 << 20, "vmem_limit_cap": 40 << 20, "multi_core": True}


def _vmem_limit(pipeline_bytes, temp_bytes, cfg):
    # pipeline_bytes: one copy of every streamed in/out block (doubled for the
    # double-buffered pipeline); temp_bytes: in-kernel f32 temporaries estimate.
    want = 2 * pipeline_bytes + temp_bytes + (4 << 20)
    return int(min(max(want, 16 << 20), cfg["vmem_limit_cap"]))


def _sublane_multiple(dtype):
    # Sublane packing: f32 -> 8, bf16/f16 -> 16, int8/fp8 -> 32.
    return max(_SUBLANE, 32 // dtype.itemsize)


# ---------------------------------------------------------------------------
# Kernels
# ---------------------------------------------------------------------------


def _safe_reciprocal(total):
    # EUP approximate reciprocal (separate VLIW slot) + one Newton step; the
    # exact-divide fallback preserves the reference behaviour for non-finite
    # column sums (unstabilized softmax can overflow to inf).
    inv = pl.reciprocal(total, approx=True)
    inv = inv * (2.0 - total * inv)
    return jnp.where(jnp.isfinite(total), inv, 1.0 / total)


def _softmax_dim0_kernel(x_ref, o_ref):
    # Full reduction axis (dim 0) resident; one lane tile of columns per step.
    x_exp = jnp.exp(x_ref[...].astype(jnp.float32))
    total = jnp.sum(x_exp, axis=0, keepdims=True)            # (1, col_tile)
    o_ref[...] = (x_exp * _safe_reciprocal(total)).astype(o_ref.dtype)


def _softmax_lane_kernel(x_ref, o_ref):
    # 1-D input viewed as (1, N): reduce along lanes (XLU) instead of wasting
    # 127/128 of every vreg on a (N, 1) layout.
    x_exp = jnp.exp(x_ref[...].astype(jnp.float32))
    total = jnp.sum(x_exp, axis=-1, keepdims=True)            # (1, 1)
    o_ref[...] = (x_exp * _safe_reciprocal(total)).astype(o_ref.dtype)


def _colsum_recip_kernel(x_ref, recip_ref, acc_ref, *, n_rows, row_tile, mask_rows):
    # Two-pass, pass 1: accumulate per-column sums of exp(x) over the row-tile
    # grid axis (last, "arbitrary"); finalize by storing the reciprocal so
    # pass 2 is a pure broadcast multiply.
    r = pl.program_id(1)

    @pl.when(r == 0)
    def _():
        acc_ref[...] = jnp.zeros_like(acc_ref)

    x_exp = jnp.exp(x_ref[...].astype(jnp.float32))
    if mask_rows:
        # Ragged last row tile: rows past N hold stale VMEM -> mask in-kernel
        # instead of padding the array in HBM.
        rows = r * row_tile + jax.lax.broadcasted_iota(jnp.int32, x_exp.shape, 0)
        x_exp = jnp.where(rows < n_rows, x_exp, 0.0)
    acc_ref[...] += jnp.sum(x_exp, axis=0, keepdims=True)

    @pl.when(r == pl.num_programs(1) - 1)
    def _():
        recip_ref[...] = _safe_reciprocal(acc_ref[...])


def _normalize_kernel(x_ref, recip_ref, o_ref):
    # Two-pass, pass 2: out = exp(x) * (1 / column_sum); purely streaming.
    x_exp = jnp.exp(x_ref[...].astype(jnp.float32))
    o_ref[...] = (x_exp * recip_ref[...]).astype(o_ref.dtype)


# ---------------------------------------------------------------------------
# Wrappers
# ---------------------------------------------------------------------------


def _single_pass_col_cap(n_rows, itemsize, cfg):
    """Largest affordable lane tile with the full reduction axis resident.
    A value < 128 means single-pass does not fit -> use the two-pass path."""
    per_col = (4 * itemsize + 8) * n_rows   # in+out double-buffered + f32 temporaries
    cap = _round_down(cfg["budget"] // per_col, _LANE)
    return min(cap, _MAX_COL_TILE)


def _softmax_single_pass(x, cap, cfg):
    N, D = x.shape
    itemsize = x.dtype.itemsize
    d_ceil = _round_up(D, _LANE)
    if cfg["multi_core"] and d_ceil >= 2 * _LANE:
        # v7x: keep >= 2 column tiles so the parallel axis shards across both TCs.
        cap = min(cap, max(_LANE, _round_down(d_ceil // 2, _LANE)))

    if d_ceil <= cap:
        ct = D                      # block last dim == full array dim: no padding
        grid = (1,)
    else:
        ct = cap                    # multiple of 128; ragged last tile handled by
        grid = (pl.cdiv(D, ct),)    # clamped DMA reads + dropped OOB writes
    blk = N * ct * itemsize

    return pl.pallas_call(
        _softmax_dim0_kernel,
        out_shape=jax.ShapeDtypeStruct((N, D), x.dtype),
        grid_spec=pltpu.PrefetchScalarGridSpec(
            num_scalar_prefetch=0,
            grid=grid,
            in_specs=[pl.BlockSpec((N, ct), lambda j: (0, j))],
            out_specs=pl.BlockSpec((N, ct), lambda j: (0, j)),
        ),
        compiler_params=pltpu.CompilerParams(
            dimension_semantics=("parallel",),
            vmem_limit_bytes=_vmem_limit(2 * blk, 2 * N * ct * 4, cfg),
        ),
        cost_estimate=pl.CostEstimate(
            flops=int(2 * N * D),
            transcendentals=int(N * D),
            bytes_accessed=int(2 * N * D * itemsize),
        ),
    )(x)


def _softmax_two_pass(x, cfg):
    N, D = x.shape
    itemsize = x.dtype.itemsize
    d_ceil = _round_up(D, _LANE)

    col_cap = min(512, d_ceil)
    if cfg["multi_core"] and d_ceil >= 2 * _LANE:
        col_cap = min(col_cap, max(_LANE, _round_down(d_ceil // 2, _LANE)))
    if d_ceil <= col_cap:
        ct, n_col_tiles = D, 1
    else:
        ct, n_col_tiles = col_cap, pl.cdiv(D, col_cap)

    sub = _sublane_multiple(x.dtype)
    rt = _round_down(cfg["budget"] // ((4 * itemsize + 8) * ct), sub)
    rt = max(sub, min(rt, _MAX_ROW_TILE, _round_up(N, sub)))
    n_row_tiles = pl.cdiv(N, rt)
    mask_rows = (N % rt) != 0

    in_blk = rt * ct * itemsize
    sum_blk = ct * 4

    # Pass 1: per-column 1/sum(exp(x)), accumulated across row tiles
    # (column axis outer so the (1, ct) accumulator block stays resident).
    recip = pl.pallas_call(
        functools.partial(_colsum_recip_kernel, n_rows=N, row_tile=rt,
                          mask_rows=mask_rows),
        out_shape=jax.ShapeDtypeStruct((1, D), jnp.float32),
        grid_spec=pltpu.PrefetchScalarGridSpec(
            num_scalar_prefetch=0,
            grid=(n_col_tiles, n_row_tiles),
            in_specs=[pl.BlockSpec((rt, ct), lambda j, r: (r, j))],
            out_specs=pl.BlockSpec((1, ct), lambda j, r: (0, j)),
            scratch_shapes=[pltpu.VMEM((1, ct), jnp.float32)],
        ),
        compiler_params=pltpu.CompilerParams(
            dimension_semantics=("parallel", "arbitrary"),
            vmem_limit_bytes=_vmem_limit(in_blk + sum_blk,
                                         rt * ct * 4 + 4 * sum_blk, cfg),
        ),
        cost_estimate=pl.CostEstimate(
            flops=int(N * D),
            transcendentals=int(N * D),
            bytes_accessed=int(N * D * itemsize + D * 4),
        ),
    )(x)

    # Pass 2: out = exp(x) * recip; fully parallel over both grid axes.
    return pl.pallas_call(
        _normalize_kernel,
        out_shape=jax.ShapeDtypeStruct((N, D), x.dtype),
        grid_spec=pltpu.PrefetchScalarGridSpec(
            num_scalar_prefetch=0,
            grid=(n_col_tiles, n_row_tiles),
            in_specs=[
                pl.BlockSpec((rt, ct), lambda j, r: (r, j)),
                pl.BlockSpec((1, ct), lambda j, r: (0, j)),
            ],
            out_specs=pl.BlockSpec((rt, ct), lambda j, r: (r, j)),
        ),
        compiler_params=pltpu.CompilerParams(
            dimension_semantics=("parallel", "parallel"),
            vmem_limit_bytes=_vmem_limit(2 * in_blk + sum_blk, 2 * rt * ct * 4, cfg),
        ),
        cost_estimate=pl.CostEstimate(
            flops=int(2 * N * D),
            transcendentals=int(N * D),
            bytes_accessed=int(2 * N * D * itemsize + D * 4),
        ),
    )(x, recip)


def _softmax_1d(x, cfg):
    N = x.shape[0]
    itemsize = x.dtype.itemsize
    x2 = x.reshape(1, N)   # free view; reduction over dim 0 == whole vector
    out = pl.pallas_call(
        _softmax_lane_kernel,
        out_shape=jax.ShapeDtypeStruct((1, N), x.dtype),
        grid_spec=pltpu.PrefetchScalarGridSpec(
            num_scalar_prefetch=0,
            grid=(1,),
            in_specs=[pl.BlockSpec((1, N), lambda i: (0, 0))],
            out_specs=pl.BlockSpec((1, N), lambda i: (0, 0)),
        ),
        compiler_params=pltpu.CompilerParams(
            dimension_semantics=("arbitrary",),
            vmem_limit_bytes=_vmem_limit(2 * N * itemsize, 2 * N * 4, cfg),
        ),
        cost_estimate=pl.CostEstimate(
            flops=int(2 * N),
            transcendentals=int(N),
            bytes_accessed=int(2 * N * itemsize),
        ),
    )(x2)
    return out.reshape(x.shape)


def softmax_dim0(x, *, force_two_pass=False):
    """Pallas TPU implementation of `exp(x) / exp(x).sum(0, keepdims=True)`.

    # TODO(synk): like the reference module, this is the *unstabilized* softmax
    # (no max subtraction); inputs > ~88.7 overflow to inf, matching torch.exp.
    """
    cfg = _tpu_config()
    orig_shape = x.shape

    if x.ndim == 1:
        if not force_two_pass and (4 * x.dtype.itemsize + 12) * x.shape[0] <= cfg["budget"]:
            return _softmax_1d(x, cfg)
        x2 = x.reshape(x.shape[0], 1)
    elif x.ndim == 2:
        x2 = x
    else:
        # Reduction is over dim 0; all trailing dims are independent columns.
        x2 = x.reshape(x.shape[0], -1)

    N, D = x2.shape
    cap = 0 if force_two_pass else _single_pass_col_cap(N, x2.dtype.itemsize, cfg)
    if cap >= _LANE:
        out2 = _softmax_single_pass(x2, cap, cfg)
    else:
        out2 = _softmax_two_pass(x2, cfg)
    return out2.reshape(orig_shape)


if __name__ == "__main__":
    # Small shape consistent with the module's forward: seq=8, hidden=32.
    x = jax.random.normal(jax.random.PRNGKey(0), (8, 32), dtype=jnp.float32)
    out = jax.block_until_ready(softmax_dim0(x))
    x_exp = jnp.exp(x)
    ref = x_exp / jnp.sum(x_exp, axis=0, keepdims=True)
    assert out.shape == x.shape and out.dtype == x.dtype
    assert jnp.allclose(out, ref, atol=1e-5, rtol=1e-5)

    # 1-D input: lane-oriented reduction path (no (N,1) lane waste, no padding).
    x1 = jax.random.normal(jax.random.PRNGKey(1), (1000,), dtype=jnp.float32)
    out1 = jax.block_until_ready(softmax_dim0(x1))
    ref1 = jnp.exp(x1) / jnp.sum(jnp.exp(x1))
    assert out1.shape == x1.shape and out1.dtype == x1.dtype
    assert jnp.allclose(out1, ref1, atol=1e-5, rtol=1e-5)

    # Two-pass path: ragged row tiles (2000 % 1024 != 0) and a non-128-aligned
    # width (300), both handled in-kernel with no HBM padding or slicing.
    x2 = jax.random.normal(jax.random.PRNGKey(2), (2000, 300), dtype=jnp.float32)
    out2 = jax.block_until_ready(softmax_dim0(x2, force_two_pass=True))
    x2e = jnp.exp(x2)
    ref2 = x2e / jnp.sum(x2e, axis=0, keepdims=True)
    assert out2.shape == x2.shape and out2.dtype == x2.dtype
    assert jnp.allclose(out2, ref2, atol=1e-5, rtol=1e-5)

    print("KERNEL_OK")
</pallas_src>

<mosaic_0001>
module attributes {stable_mosaic.version = 11 : i64} {
  func.func @_softmax_dim0_kernel(%arg0: i32, %arg1: memref<8x32xf32, #tpu.memory_space<vmem>>, %arg2: memref<8x32xf32, #tpu.memory_space<vmem>>) attributes {dimension_semantics = [#tpu.dimension_semantics<parallel>], iteration_bounds = array<i64: 1>, scalar_prefetch = 0 : i64, scratch_operands = 0 : i64, tpu.core_type = #tpu.core_type<tc>, window_params = [{transform_indices = @transform_0, window_bounds = array<i64: 8, 32>}, {transform_indices = @transform_1, window_bounds = array<i64: 8, 32>}]} {
    %c0 = arith.constant 0 : index
    %c0_0 = arith.constant 0 : index
    %0 = vector.load %arg1[%c0, %c0_0] : memref<8x32xf32, #tpu.memory_space<vmem>>, vector<8x32xf32>
    %1 = math.exp %0 : vector<8x32xf32>
    %cst = arith.constant dense<0.000000e+00> : vector<32xf32>
    %2 = vector.multi_reduction <add>, %1, %cst [0] : vector<8x32xf32> to vector<32xf32>
    %3 = vector.shape_cast %2 : vector<32xf32> to vector<1x32xf32>
    %4 = tpu.reciprocal %3 {approx = true} : vector<1x32xf32> -> vector<1x32xf32>
    %5 = arith.mulf %3, %4 : vector<1x32xf32>
    %cst_1 = arith.constant 2.000000e+00 : f32
    %6 = vector.broadcast %cst_1 : f32 to vector<1x32xf32>
    %7 = arith.subf %6, %5 : vector<1x32xf32>
    %8 = arith.mulf %4, %7 : vector<1x32xf32>
    %9 = tpu.weird %3 : vector<1x32xf32> -> vector<1x32xi1>
    %cst_2 = arith.constant dense<true> : vector<1x32xi1>
    %10 = arith.xori %9, %cst_2 : vector<1x32xi1>
    %cst_3 = arith.constant 1.000000e+00 : f32
    %11 = vector.broadcast %cst_3 : f32 to vector<1x32xf32>
    %12 = arith.divf %11, %3 : vector<1x32xf32>
    %13 = arith.select %10, %8, %12 : vector<1x32xi1>, vector<1x32xf32>
    %14 = vector.broadcast %13 : vector<1x32xf32> to vector<8x32xf32>
    %15 = arith.mulf %1, %14 : vector<8x32xf32>
    %c0_4 = arith.constant 0 : index
    %c0_5 = arith.constant 0 : index
    %16 = vector.load %arg2[%c0_4, %c0_5] : memref<8x32xf32, #tpu.memory_space<vmem>>, vector<8x32xf32>
    tpu.vector_store %arg2[%c0_4, %c0_5], %15 {strides = array<i32>} : memref<8x32xf32, #tpu.memory_space<vmem>>, vector<8x32xf32>,
    return
  }
  func.func @transform_0(%arg0: i32) -> (i32, i32) {
    %c0_i32 = arith.constant 0 : i32
    %c0_i32_0 = arith.constant 0 : i32
    return %c0_i32, %arg0 : i32, i32
  }
  func.func @transform_1(%arg0: i32) -> (i32, i32) {
    %c0_i32 = arith.constant 0 : i32
    %c0_i32_0 = arith.constant 0 : i32
    return %c0_i32, %arg0 : i32, i32
  }
}

</mosaic_0001>

<llo_original>
// kernel: tpu_custom_call.1
$region0: #{tpu_custom_call.1}
  #allocation0 [shape = 'u32[]', space=smem, size = 0x4, offset = 0x4, fixed_abs, tag = 'smem constant byte address 0x4 - core index']
  #allocation1 [shape = 'u32[144,128]{1,0:T(1,128)}', space=vmem, size = 0x12000, scoped, tag = 'internal scratch']
  %s0 = inlined_call_operand.hbm [shape: f32[8,32], index: 0, kind: input, shape index: {}]
  %s1 = inlined_call_operand.hbm [shape: f32[8,32], index: 1, kind: output, shape index: {}]
  %s2 = sld [smem:[#allocation0]]
  $region18: #{tpu_custom_call.1} parent=0
    _
  %s4 = ssub.s32 1, %s2
  %s5 = scalar_select 0, %s4, %s2
  $region1: #{tpu_custom_call.1} parent=0
    #allocation2 [shape = 'u8[4096]{0}', space=vmem, size = 0x1000, scoped, tag = 'input window, operand 0, single buffered']
    #allocation3 [shape = 's32[1]{0}', space=sflag, size = 0x4, scoped, tag = 'scoped memory for tpu_custom_call.1']
    #allocation4 [shape = 's32[1]{0}', space=sflag, size = 0x4, scoped, tag = 'scoped memory for tpu_custom_call.1']
    #allocation5 [shape = 'u8[4096]{0}', space=vmem, size = 0x1000, scoped, tag = 'output window, operand 0, single buffered']
    %6 = vsyncpa [#allocation3], 0
    %7 = vsyncpa [#allocation4], 0
    // Predicated region
    $region2: #{tpu_custom_call.1} parent=1 // pred_check
      _
    $region3: #{tpu_custom_call.1} parent=1 // pred_check_branch
      %9 = sbr.rel (0) target = $region5
    $region4: #{tpu_custom_call.1} parent=1 // pred_region
      %s11 = ssub.s32 128, 128
      %12 = vsyncadd [#allocation3], %s11
      %s14 = sshll.u32 [#allocation2], 4
      %s15 = int_to_ptr.vmem [resolvable:$true] %s14
      %17 = dma.hbm_to_vmem [thread:$0]  %s0, 128, %s15, [#allocation3]
    $region5: #{tpu_custom_call.1} parent=1 // pred_fallthru
      _
    // Predicated region
    $region6: #{tpu_custom_call.1} parent=1 // pred_check
      _
    $region7: #{tpu_custom_call.1} parent=1 // pred_check_branch
      %19 = sbr.rel (0) target = $region9
    $region8: #{tpu_custom_call.1} parent=1 // pred_region
      %20 = dma.done [#allocation3], 128
    $region9: #{tpu_custom_call.1} parent=1 // pred_fallthru
      _
    %v21 = vld [vmem:[#allocation2] sm:$0xff]
    %v22 = vmul.f32 %v21, 1.442695
    %v23 = vpow.pop %v22
    %vm24 = vcmask 261120
    %v25 = vsel %vm24, %v23, 0.0
    %v26 = vrot.slane %v25, 4
    %v27 = vadd.f32 %v25, %v26
    %v28 = vrot.slane %v27, 2
    %v29 = vadd.f32 %v27, %v28
    %v30 = vrot.slane %v29, 1
    %v31 = vadd.f32 %v29, %v30
    %v32 = vrcp.pop %v31
    %v33 = vmul.f32 %v31, %v32
    %v34 = vsub.f32 2.0, %v33
    %v35 = vmul.f32 %v32, %v34
    %vm36 = vweird.f32 %v31
    %vm37 = vmxor %vm36, 1
    %v38 = vrcp.pop %v31
    %v39 = vmul.f32 1.0, %v38
    %v40 = vsel %vm37, %v35, %v39
    %v41 = vmul.f32 %v23, %v40
    %42 = vst.msk [vmem:[#allocation5] sm:$0xff] %vm24, %v41
    // Predicated region
    $region10: #{tpu_custom_call.1} parent=1 // pred_check
      _
    $region11: #{tpu_custom_call.1} parent=1 // pred_check_branch
      %44 = sbr.rel (0) target = $region13
    $region12: #{tpu_custom_call.1} parent=1 // pred_region
      %s46 = ssub.s32 128, 128
      %47 = vsyncadd [#allocation4], %s46
      %s49 = sshll.u32 [#allocation5], 4
      %s50 = int_to_ptr.vmem [resolvable:$true] %s49
      %52 = dma.vmem_to_hbm [thread:$0]  %s50, 128, %s1, [#allocation4]
    $region13: #{tpu_custom_call.1} parent=1 // pred_fallthru
      _
    // Predicated region
    $region14: #{tpu_custom_call.1} parent=1 // pred_check
      _
    $region15: #{tpu_custom_call.1} parent=1 // pred_check_branch
      %54 = sbr.rel (0) target = $region17
    $region16: #{tpu_custom_call.1} parent=1 // pred_region
      %55 = dma.done [#allocation4], 128
    $region17: #{tpu_custom_call.1} parent=1 // pred_fallthru
      _
    %56 = vsyncpa [#allocation3], 1
    %57 = vsyncpa [#allocation4], 1

</llo_original>
